<compile_context>
chip_gen: v6e
topology: v6e:2x2x1
jax: 0.10.0
libtpu: 0.0.40
codegen_flags: <defaults>
</compile_context>

<pallas_src>
import functools

import jax
import jax.numpy as jnp
from jax.experimental import pallas as pl
from jax.experimental.pallas import tpu as pltpu

_NPART = 9  # number of per-tile partial sums emitted by the kernel


def _velora_loss_kernel(
    # ---- static configuration (bound via functools.partial) ----
    batch, c_dom, c_math, c_lang, needs_mask,
    # ---- refs ----
    logits_ref,   # [c_dom+c_math+c_lang, TB] native dtype; classes on sublanes,
                  #   batch on lanes
    meta_ref,     # [8, TB] f32: rows 0-2 = int32 labels (bitcast); rows 3-7 =
                  #   result_labels, math_results, consistency, write_gate, usage
    out_ref,      # [1, _NPART] f32 SMEM: per-tile partial sums
):
    i = pl.program_id(0)
    tb = meta_ref.shape[1]

    # Validity mask only when the last batch tile overhangs the true batch.
    if needs_mask:
        lane = jax.lax.broadcasted_iota(jnp.int32, (1, tb), 1)
        valid = (i * tb + lane) < batch                      # [1, TB] bool
    else:
        valid = None

    def vwhere(t):
        # jnp.where, not multiply: the overhang lanes hold unspecified data
        # that may be NaN/Inf, and 0 * NaN = NaN.
        return t if valid is None else jnp.where(valid, t, 0.0)

    # int32 labels travel bitcast inside the f32 metadata slab.
    dom_lab = pltpu.bitcast(meta_ref[0:1, :], jnp.int32)     # [1, TB]
    math_lab = pltpu.bitcast(meta_ref[1:2, :], jnp.int32)
    lang_lab = pltpu.bitcast(meta_ref[2:3, :], jnp.int32)
    res_lab = meta_ref[3:4, :]
    res = meta_ref[4:5, :]
    cons = meta_ref[5:6, :]
    gate = meta_ref[6:7, :]
    usage = meta_ref[7:8, :]

    def segment_ce(start, size, lab):
        # Per-sample CE over the *statically sliced* rows of this head only
        # (start/size are Python constants) -> no full-slab -inf masking.
        xs = logits_ref[start:start + size, :].astype(jnp.float32)  # [size, TB]
        m = jnp.max(xs, axis=0, keepdims=True)                      # [1, TB]
        lse = jnp.log(jnp.sum(jnp.exp(xs - m), axis=0, keepdims=True)) + m
        cls = jax.lax.broadcasted_iota(jnp.int32, (size, tb), 0)
        picked = jnp.sum(jnp.where(cls == lab, xs, 0.0), axis=0, keepdims=True)
        return lse - picked                                          # [1, TB]

    dom_ce = segment_ce(0, c_dom, dom_lab)
    math_ce = segment_ce(c_dom, c_math, math_lab)
    lang_ce = segment_ce(c_dom + c_math, c_lang, lang_lab)

    is_math = dom_lab == 0
    is_lang = dom_lab == 1
    if valid is not None:
        is_math = jnp.logical_and(is_math, valid)
        is_lang = jnp.logical_and(is_lang, valid)

    diff = res - res_lab
    mem = (gate - 0.5) ** 2 + (usage - 0.5) ** 2   # fused regulariser row

    contribs = (
        vwhere(dom_ce),                                               # 0 sum domain CE
        jnp.where(is_math, math_ce, 0.0),                             # 1 sum math-op CE
        jnp.where(is_lang, lang_ce, 0.0),                             # 2 sum lang-task CE
        is_math.astype(jnp.float32),                                  # 3 n_math
        is_lang.astype(jnp.float32),                                  # 4 n_lang
        jnp.where(is_math, diff * diff, 0.0),                         # 5 sum squared err
        jnp.where(is_math,
                  jnp.abs(diff) / (jnp.abs(res_lab) + 1e-8), 0.0),    # 6 sum relative err
        vwhere(cons),                                                 # 7 sum consistency
        vwhere(mem),                                                  # 8 sum memory reg
    )
    for k, c in enumerate(contribs):
        out_ref[0, k] = jnp.sum(c)


def velora_loss(outputs, domain_logits, math_logits, lang_logits,
                domain_labels, math_op_labels, language_task_labels,
                result_labels, math_results, consistency_scores,
                write_gate, memory_usage, *,
                domain_weight=1.0, tasks_weight=1.0, results_weight=1.0,
                consistency_weight=0.5, memory_weight=0.2,
                use_relative_error=True, relative_error_weight=0.5,
                batch_tile=8192):
    """VeloraLoss forward. `outputs` [B, H] is only used for the batch size."""
    B = outputs.shape[0]
    c_dom = domain_logits.shape[-1]
    c_math = math_logits.shape[-1]
    c_lang = lang_logits.shape[-1]
    w_total = c_dom + c_math + c_lang

    # ---- pack inputs into 2 lane-major slabs (batch on lanes) ----
    # Producing the logits in [C, B] layout upstream avoids this repack
    # entirely; otherwise allow_input_fusion lets XLA fuse the transposes into
    # the pallas_call input DMAs.  No jnp.pad: the ragged last tile is masked
    # in-kernel.  Logits keep their native dtype; widened to f32 in-kernel.
    logits_t = jnp.concatenate(
        [jnp.asarray(domain_logits).T, jnp.asarray(math_logits).T,
         jnp.asarray(lang_logits).T], axis=0)                          # [W, B]

    labels_i32 = jnp.stack(
        [jnp.asarray(domain_labels), jnp.asarray(math_op_labels),
         jnp.asarray(language_task_labels)], axis=0).astype(jnp.int32)  # [3, B]
    scalars_f32 = jnp.stack(
        [jnp.asarray(result_labels), jnp.asarray(math_results),
         jnp.asarray(consistency_scores), jnp.asarray(write_gate),
         jnp.asarray(memory_usage)], axis=0).astype(jnp.float32)        # [5, B]
    meta = jnp.concatenate(
        [jax.lax.bitcast_convert_type(labels_i32, jnp.float32),
         scalars_f32], axis=0)                                          # [8, B]

    # ---- batch (lane) tiling: big tiles amortise per-grid-step overhead ----
    if B <= batch_tile:
        tb, n_tiles = B, 1
    else:
        assert batch_tile % 128 == 0, "batch_tile must be a multiple of 128"
        tb = batch_tile
        n_tiles = -(-B // tb)
    needs_mask = (n_tiles * tb != B)

    kernel = functools.partial(
        _velora_loss_kernel, B, c_dom, c_math, c_lang, needs_mask)

    partials = pl.pallas_call(
        kernel,
        out_shape=jax.ShapeDtypeStruct((n_tiles, _NPART), jnp.float32),
        grid_spec=pltpu.PrefetchScalarGridSpec(
            num_scalar_prefetch=0,
            grid=(n_tiles,),
            in_specs=[
                pl.BlockSpec((w_total, tb), lambda i: (0, i)),
                pl.BlockSpec((8, tb), lambda i: (0, i)),
            ],
            out_specs=pl.BlockSpec((1, _NPART), lambda i: (i, 0),
                                   memory_space=pltpu.MemorySpace.SMEM),
        ),
        compiler_params=pltpu.CompilerParams(
            dimension_semantics=("parallel",),
            allow_input_fusion=[True, True]),
    )(logits_t, meta)

    # ---- ~30-flop finalize in plain JAX on the per-tile partial sums ----
    p = jnp.sum(partials, axis=0)
    sum_dom, sum_mce, sum_lce = p[0], p[1], p[2]
    n_math, n_lang = p[3], p[4]
    sum_sq, sum_rel = p[5], p[6]
    sum_cons, sum_mem = p[7], p[8]

    inv_b = 1.0 / B
    inv_math = 1.0 / jnp.maximum(n_math, 1.0)
    inv_lang = 1.0 / jnp.maximum(n_lang, 1.0)

    domain_loss = sum_dom * inv_b
    tasks_loss = sum_mce * inv_math + sum_lce * inv_lang
    results_loss = sum_sq * inv_math
    if use_relative_error:
        results_loss = results_loss + relative_error_weight * (sum_rel * inv_math)
    consistency_loss = 1.0 - sum_cons * inv_b
    memory_loss = sum_mem * inv_b
    total = (domain_weight * domain_loss + tasks_weight * tasks_loss +
             results_weight * results_loss + consistency_weight * consistency_loss +
             memory_weight * memory_loss)
    return {'domain': domain_loss, 'tasks': tasks_loss, 'results': results_loss,
            'consistency': consistency_loss, 'memory': memory_loss, 'total': total}


def _reference(domain_logits, math_logits, lang_logits,
               domain_labels, math_op_labels, language_task_labels,
               result_labels, math_results, consistency_scores,
               write_gate, memory_usage, *,
               domain_weight=1.0, tasks_weight=1.0, results_weight=1.0,
               consistency_weight=0.5, memory_weight=0.2,
               relative_error_weight=0.5):
    """Pure-JAX reference mirroring the PyTorch semantics (for verification)."""
    def ce(logits, labels):
        lse = jax.nn.logsumexp(logits, axis=-1)
        picked = jnp.take_along_axis(logits, labels[:, None], axis=-1)[:, 0]
        return lse - picked

    math_mask = domain_labels == 0
    lang_mask = domain_labels == 1
    domain_loss = jnp.mean(ce(domain_logits, domain_labels))
    math_loss = jnp.mean(ce(math_logits, math_op_labels)[math_mask]) if bool(math_mask.any()) else 0.0
    lang_loss = jnp.mean(ce(lang_logits, language_task_labels)[lang_mask]) if bool(lang_mask.any()) else 0.0
    tasks_loss = math_loss + lang_loss
    if bool(math_mask.any()):
        r = math_results[math_mask]
        l = result_labels[math_mask]
        mse = jnp.mean((r - l) ** 2)
        rel = jnp.mean(jnp.abs(r - l) / (jnp.abs(l) + 1e-8))
        results_loss = mse + relative_error_weight * rel
    else:
        results_loss = 0.0
    consistency_loss = jnp.mean(1.0 - consistency_scores)
    memory_loss = jnp.mean((write_gate - 0.5) ** 2) + jnp.mean((memory_usage - 0.5) ** 2)
    total = (domain_weight * domain_loss + tasks_weight * tasks_loss +
             results_weight * results_loss + consistency_weight * consistency_loss +
             memory_weight * memory_loss)
    return {'domain': domain_loss, 'tasks': tasks_loss, 'results': results_loss,
            'consistency': consistency_loss, 'memory': memory_loss, 'total': total}


def _make_inputs(key, B, H, n_dom, n_math, n_lang):
    keys = jax.random.split(key, 10)
    outputs = jax.random.normal(keys[0], (B, H), jnp.float32)
    domain_logits = jax.random.normal(keys[1], (B, n_dom), jnp.float32)
    math_logits = jax.random.normal(keys[2], (B, n_math), jnp.float32)
    lang_logits = jax.random.normal(keys[3], (B, n_lang), jnp.float32)
    domain_labels = jax.random.randint(keys[4], (B,), 0, n_dom, jnp.int32)
    math_op_labels = jax.random.randint(keys[5], (B,), 0, n_math, jnp.int32)
    language_task_labels = jax.random.randint(keys[6], (B,), 0, n_lang, jnp.int32)
    result_labels = jax.random.normal(keys[7], (B,), jnp.float32) * 3.0 + 1.0
    math_results = result_labels + 0.1 * jax.random.normal(keys[8], (B,), jnp.float32)
    aux = jax.nn.sigmoid(jax.random.normal(keys[9], (B, 3), jnp.float32))
    return (outputs, domain_logits, math_logits, lang_logits, domain_labels,
            math_op_labels, language_task_labels, result_labels, math_results,
            aux[:, 0], aux[:, 1], aux[:, 2])


if __name__ == "__main__":
    # TODO(synk): the PyTorch module walks per-sample metadata dicts
    # (expert_metadata[i]['final_result']); here math_results is a dense [B]
    # array input, and losses are returned as JAX scalars instead of .item().
    H = 32
    N_DOMAINS, N_MATH_OPS, N_LANG_TASKS = 2, 4, 5
    key_small, key_big = jax.random.split(jax.random.PRNGKey(0))
    names = ('domain', 'tasks', 'results', 'consistency', 'memory', 'total')

    # --- small case (single tile, no masking path) ---
    B = 8
    args_small = _make_inputs(key_small, B, H, N_DOMAINS, N_MATH_OPS, N_LANG_TASKS)
    losses = jax.block_until_ready(velora_loss(*args_small))
    ref = _reference(*args_small[1:])
    for k in names:
        assert jnp.allclose(losses[k], ref[k], rtol=1e-4, atol=1e-5), (
            f"[B={B}] mismatch in {k}: {losses[k]} vs {ref[k]}")

    # --- gridded case: multiple batch tiles + ragged (masked) last tile ---
    B2 = 300
    args_big = _make_inputs(key_big, B2, H, N_DOMAINS, N_MATH_OPS, N_LANG_TASKS)
    losses2 = jax.block_until_ready(velora_loss(*args_big, batch_tile=128))
    ref2 = _reference(*args_big[1:])
    for k in names:
        assert jnp.allclose(losses2[k], ref2[k], rtol=1e-4, atol=1e-5), (
            f"[B={B2}] mismatch in {k}: {losses2[k]} vs {ref2[k]}")

    print("KERNEL_OK")
</pallas_src>

<mosaic_0001>
module attributes {stable_mosaic.version = 11 : i64} {
  func.func @_velora_loss_kernel(%arg0: i32, %arg1: memref<11x8xf32, #tpu.memory_space<vmem>>, %arg2: memref<8x8xf32, #tpu.memory_space<vmem>>, %arg3: memref<1x9xf32, #tpu.memory_space<smem>>) attributes {dimension_semantics = [#tpu.dimension_semantics<parallel>], iteration_bounds = array<i64: 1>, scalar_prefetch = 0 : i64, scratch_operands = 0 : i64, tpu.core_type = #tpu.core_type<tc>, window_params = [{transform_indices = @transform_0, window_bounds = array<i64: 11, 8>}, {transform_indices = @transform_1, window_bounds = array<i64: 8, 8>}, {transform_indices = @transform_2, window_bounds = array<i64: 1, 9>}]} {
    %c0 = arith.constant 0 : index
    %c0_0 = arith.constant 0 : index
    %0 = vector.load %arg2[%c0, %c0_0] : memref<8x8xf32, #tpu.memory_space<vmem>>, vector<1x8xf32>
    %1 = tpu.bitcast %0 : vector<1x8xf32> -> vector<1x8xi32>
    %c1 = arith.constant 1 : index
    %c0_1 = arith.constant 0 : index
    %2 = vector.load %arg2[%c1, %c0_1] : memref<8x8xf32, #tpu.memory_space<vmem>>, vector<1x8xf32>
    %3 = tpu.bitcast %2 : vector<1x8xf32> -> vector<1x8xi32>
    %c2 = arith.constant 2 : index
    %c0_2 = arith.constant 0 : index
    %4 = vector.load %arg2[%c2, %c0_2] : memref<8x8xf32, #tpu.memory_space<vmem>>, vector<1x8xf32>
    %5 = tpu.bitcast %4 : vector<1x8xf32> -> vector<1x8xi32>
    %c3 = arith.constant 3 : index
    %c0_3 = arith.constant 0 : index
    %6 = vector.load %arg2[%c3, %c0_3] : memref<8x8xf32, #tpu.memory_space<vmem>>, vector<1x8xf32>
    %c4 = arith.constant 4 : index
    %c0_4 = arith.constant 0 : index
    %7 = vector.load %arg2[%c4, %c0_4] : memref<8x8xf32, #tpu.memory_space<vmem>>, vector<1x8xf32>
    %c5 = arith.constant 5 : index
    %c0_5 = arith.constant 0 : index
    %8 = vector.load %arg2[%c5, %c0_5] : memref<8x8xf32, #tpu.memory_space<vmem>>, vector<1x8xf32>
    %c6 = arith.constant 6 : index
    %c0_6 = arith.constant 0 : index
    %9 = vector.load %arg2[%c6, %c0_6] : memref<8x8xf32, #tpu.memory_space<vmem>>, vector<1x8xf32>
    %c7 = arith.constant 7 : index
    %c0_7 = arith.constant 0 : index
    %10 = vector.load %arg2[%c7, %c0_7] : memref<8x8xf32, #tpu.memory_space<vmem>>, vector<1x8xf32>
    %c0_8 = arith.constant 0 : index
    %c0_9 = arith.constant 0 : index
    %11 = vector.load %arg1[%c0_8, %c0_9] : memref<11x8xf32, #tpu.memory_space<vmem>>, vector<2x8xf32>
    %cst = arith.constant dense<0xFF800000> : vector<8xf32>
    %12 = vector.multi_reduction <maximumf>, %11, %cst [0] : vector<2x8xf32> to vector<8xf32>
    %13 = vector.shape_cast %12 : vector<8xf32> to vector<1x8xf32>
    %14 = vector.broadcast %13 : vector<1x8xf32> to vector<2x8xf32>
    %15 = arith.subf %11, %14 : vector<2x8xf32>
    %16 = math.exp %15 : vector<2x8xf32>
    %cst_10 = arith.constant dense<0.000000e+00> : vector<8xf32>
    %17 = vector.multi_reduction <add>, %16, %cst_10 [0] : vector<2x8xf32> to vector<8xf32>
    %18 = vector.shape_cast %17 : vector<8xf32> to vector<1x8xf32>
    %19 = math.log %18 : vector<1x8xf32>
    %20 = arith.addf %19, %13 : vector<1x8xf32>
    %21 = tpu.iota {dimensions = array<i32: 0>} : vector<2x8xi32>
    %22 = vector.broadcast %1 : vector<1x8xi32> to vector<2x8xi32>
    %23 = arith.cmpi eq, %21, %22 : vector<2x8xi32>
    %cst_11 = arith.constant 0.000000e+00 : f32
    %24 = vector.broadcast %cst_11 : f32 to vector<2x8xf32>
    %25 = arith.select %23, %11, %24 : vector<2x8xi1>, vector<2x8xf32>
    %cst_12 = arith.constant dense<0.000000e+00> : vector<8xf32>
    %26 = vector.multi_reduction <add>, %25, %cst_12 [0] : vector<2x8xf32> to vector<8xf32>
    %27 = vector.shape_cast %26 : vector<8xf32> to vector<1x8xf32>
    %28 = arith.subf %20, %27 : vector<1x8xf32>
    %c2_13 = arith.constant 2 : index
    %c0_14 = arith.constant 0 : index
    %29 = vector.load %arg1[%c2_13, %c0_14] : memref<11x8xf32, #tpu.memory_space<vmem>>, vector<4x8xf32>
    %cst_15 = arith.constant dense<0xFF800000> : vector<8xf32>
    %30 = vector.multi_reduction <maximumf>, %29, %cst_15 [0] : vector<4x8xf32> to vector<8xf32>
    %31 = vector.shape_cast %30 : vector<8xf32> to vector<1x8xf32>
    %32 = vector.broadcast %31 : vector<1x8xf32> to vector<4x8xf32>
    %33 = arith.subf %29, %32 : vector<4x8xf32>
    %34 = math.exp %33 : vector<4x8xf32>
    %cst_16 = arith.constant dense<0.000000e+00> : vector<8xf32>
    %35 = vector.multi_reduction <add>, %34, %cst_16 [0] : vector<4x8xf32> to vector<8xf32>
    %36 = vector.shape_cast %35 : vector<8xf32> to vector<1x8xf32>
    %37 = math.log %36 : vector<1x8xf32>
    %38 = arith.addf %37, %31 : vector<1x8xf32>
    %39 = tpu.iota {dimensions = array<i32: 0>} : vector<4x8xi32>
    %40 = vector.broadcast %3 : vector<1x8xi32> to vector<4x8xi32>
    %41 = arith.cmpi eq, %39, %40 : vector<4x8xi32>
    %cst_17 = arith.constant 0.000000e+00 : f32
    %42 = vector.broadcast %cst_17 : f32 to vector<4x8xf32>
    %43 = arith.select %41, %29, %42 : vector<4x8xi1>, vector<4x8xf32>
    %cst_18 = arith.constant dense<0.000000e+00> : vector<8xf32>
    %44 = vector.multi_reduction <add>, %43, %cst_18 [0] : vector<4x8xf32> to vector<8xf32>
    %45 = vector.shape_cast %44 : vector<8xf32> to vector<1x8xf32>
    %46 = arith.subf %38, %45 : vector<1x8xf32>
    %c6_19 = arith.constant 6 : index
    %c0_20 = arith.constant 0 : index
    %47 = vector.load %arg1[%c6_19, %c0_20] : memref<11x8xf32, #tpu.memory_space<vmem>>, vector<5x8xf32>
    %cst_21 = arith.constant dense<0xFF800000> : vector<8xf32>
    %48 = vector.multi_reduction <maximumf>, %47, %cst_21 [0] : vector<5x8xf32> to vector<8xf32>
    %49 = vector.shape_cast %48 : vector<8xf32> to vector<1x8xf32>
    %50 = vector.broadcast %49 : vector<1x8xf32> to vector<5x8xf32>
    %51 = arith.subf %47, %50 : vector<5x8xf32>
    %52 = math.exp %51 : vector<5x8xf32>
    %cst_22 = arith.constant dense<0.000000e+00> : vector<8xf32>
    %53 = vector.multi_reduction <add>, %52, %cst_22 [0] : vector<5x8xf32> to vector<8xf32>
    %54 = vector.shape_cast %53 : vector<8xf32> to vector<1x8xf32>
    %55 = math.log %54 : vector<1x8xf32>
    %56 = arith.addf %55, %49 : vector<1x8xf32>
    %57 = tpu.iota {dimensions = array<i32: 0>} : vector<5x8xi32>
    %58 = vector.broadcast %5 : vector<1x8xi32> to vector<5x8xi32>
    %59 = arith.cmpi eq, %57, %58 : vector<5x8xi32>
    %cst_23 = arith.constant 0.000000e+00 : f32
    %60 = vector.broadcast %cst_23 : f32 to vector<5x8xf32>
    %61 = arith.select %59, %47, %60 : vector<5x8xi1>, vector<5x8xf32>
    %cst_24 = arith.constant dense<0.000000e+00> : vector<8xf32>
    %62 = vector.multi_reduction <add>, %61, %cst_24 [0] : vector<5x8xf32> to vector<8xf32>
    %63 = vector.shape_cast %62 : vector<8xf32> to vector<1x8xf32>
    %64 = arith.subf %56, %63 : vector<1x8xf32>
    %c0_i32 = arith.constant 0 : i32
    %65 = vector.broadcast %c0_i32 : i32 to vector<1x8xi32>
    %66 = arith.cmpi eq, %1, %65 : vector<1x8xi32>
    %c1_i32 = arith.constant 1 : i32
    %67 = vector.broadcast %c1_i32 : i32 to vector<1x8xi32>
    %68 = arith.cmpi eq, %1, %67 : vector<1x8xi32>
    %69 = arith.subf %7, %6 : vector<1x8xf32>
    %cst_25 = arith.constant 5.000000e-01 : f32
    %70 = vector.broadcast %cst_25 : f32 to vector<1x8xf32>
    %71 = arith.subf %9, %70 : vector<1x8xf32>
    %72 = arith.mulf %71, %71 : vector<1x8xf32>
    %cst_26 = arith.constant 5.000000e-01 : f32
    %73 = vector.broadcast %cst_26 : f32 to vector<1x8xf32>
    %74 = arith.subf %10, %73 : vector<1x8xf32>
    %75 = arith.mulf %74, %74 : vector<1x8xf32>
    %76 = arith.addf %72, %75 : vector<1x8xf32>
    %cst_27 = arith.constant 0.000000e+00 : f32
    %77 = vector.broadcast %cst_27 : f32 to vector<1x8xf32>
    %78 = arith.select %66, %46, %77 : vector<1x8xi1>, vector<1x8xf32>
    %cst_28 = arith.constant 0.000000e+00 : f32
    %79 = vector.broadcast %cst_28 : f32 to vector<1x8xf32>
    %80 = arith.select %68, %64, %79 : vector<1x8xi1>, vector<1x8xf32>
    %81 = arith.extui %66 : vector<1x8xi1> to vector<1x8xi32>
    %82 = arith.sitofp %81 : vector<1x8xi32> to vector<1x8xf32>
    %83 = arith.extui %68 : vector<1x8xi1> to vector<1x8xi32>
    %84 = arith.sitofp %83 : vector<1x8xi32> to vector<1x8xf32>
    %85 = arith.mulf %69, %69 : vector<1x8xf32>
    %cst_29 = arith.constant 0.000000e+00 : f32
    %86 = vector.broadcast %cst_29 : f32 to vector<1x8xf32>
    %87 = arith.select %66, %85, %86 : vector<1x8xi1>, vector<1x8xf32>
    %88 = math.absf %69 : vector<1x8xf32>
    %89 = math.absf %6 : vector<1x8xf32>
    %cst_30 = arith.constant 9.99999993E-9 : f32
    %90 = vector.broadcast %cst_30 : f32 to vector<1x8xf32>
    %91 = arith.addf %89, %90 : vector<1x8xf32>
    %92 = arith.divf %88, %91 : vector<1x8xf32>
    %cst_31 = arith.constant 0.000000e+00 : f32
    %93 = vector.broadcast %cst_31 : f32 to vector<1x8xf32>
    %94 = arith.select %66, %92, %93 : vector<1x8xi1>, vector<1x8xf32>
    %95 = vector.shape_cast %28 : vector<1x8xf32> to vector<1x1x8xf32>
    %cst_32 = arith.constant dense<0.000000e+00> : vector<1xf32>
    %96 = vector.multi_reduction <add>, %95, %cst_32 [1, 2] : vector<1x1x8xf32> to vector<1xf32>
    %97 = vector.shape_cast %96 : vector<1xf32> to vector<1x1x1xf32>
    %98 = vector.extract %97[0, 0, 0] : f32 from vector<1x1x1xf32>
    %c0_33 = arith.constant 0 : index
    %c0_34 = arith.constant 0 : index
    %99 = memref.load %arg3[%c0_33, %c0_34] : memref<1x9xf32, #tpu.memory_space<smem>>
    memref.store %98, %arg3[%c0_33, %c0_34] : memref<1x9xf32, #tpu.memory_space<smem>>
    %100 = vector.shape_cast %78 : vector<1x8xf32> to vector<1x1x8xf32>
    %cst_35 = arith.constant dense<0.000000e+00> : vector<1xf32>
    %101 = vector.multi_reduction <add>, %100, %cst_35 [1, 2] : vector<1x1x8xf32> to vector<1xf32>
    %102 = vector.shape_cast %101 : vector<1xf32> to vector<1x1x1xf32>
    %103 = vector.extract %102[0, 0, 0] : f32 from vector<1x1x1xf32>
    %c0_36 = arith.constant 0 : index
    %c1_37 = arith.constant 1 : index
    %104 = memref.load %arg3[%c0_36, %c1_37] : memref<1x9xf32, #tpu.memory_space<smem>>
    memref.store %103, %arg3[%c0_36, %c1_37] : memref<1x9xf32, #tpu.memory_space<smem>>
    %105 = vector.shape_cast %80 : vector<1x8xf32> to vector<1x1x8xf32>
    %cst_38 = arith.constant dense<0.000000e+00> : vector<1xf32>
    %106 = vector.multi_reduction <add>, %105, %cst_38 [1, 2] : vector<1x1x8xf32> to vector<1xf32>
    %107 = vector.shape_cast %106 : vector<1xf32> to vector<1x1x1xf32>
    %108 = vector.extract %107[0, 0, 0] : f32 from vector<1x1x1xf32>
    %c0_39 = arith.constant 0 : index
    %c2_40 = arith.constant 2 : index
    %109 = memref.load %arg3[%c0_39, %c2_40] : memref<1x9xf32, #tpu.memory_space<smem>>
    memref.store %108, %arg3[%c0_39, %c2_40] : memref<1x9xf32, #tpu.memory_space<smem>>
    %110 = vector.shape_cast %82 : vector<1x8xf32> to vector<1x1x8xf32>
    %cst_41 = arith.constant dense<0.000000e+00> : vector<1xf32>
    %111 = vector.multi_reduction <add>, %110, %cst_41 [1, 2] : vector<1x1x8xf32> to vector<1xf32>
    %112 = vector.shape_cast %111 : vector<1xf32> to vector<1x1x1xf32>
    %113 = vector.extract %112[0, 0, 0] : f32 from vector<1x1x1xf32>
    %c0_42 = arith.constant 0 : index
    %c3_43 = arith.constant 3 : index
    %114 = memref.load %arg3[%c0_42, %c3_43] : memref<1x9xf32, #tpu.memory_space<smem>>
    memref.store %113, %arg3[%c0_42, %c3_43] : memref<1x9xf32, #tpu.memory_space<smem>>
    %115 = vector.shape_cast %84 : vector<1x8xf32> to vector<1x1x8xf32>
    %cst_44 = arith.constant dense<0.000000e+00> : vector<1xf32>
    %116 = vector.multi_reduction <add>, %115, %cst_44 [1, 2] : vector<1x1x8xf32> to vector<1xf32>
    %117 = vector.shape_cast %116 : vector<1xf32> to vector<1x1x1xf32>
    %118 = vector.extract %117[0, 0, 0] : f32 from vector<1x1x1xf32>
    %c0_45 = arith.constant 0 : index
    %c4_46 = arith.constant 4 : index
    %119 = memref.load %arg3[%c0_45, %c4_46] : memref<1x9xf32, #tpu.memory_space<smem>>
    memref.store %118, %arg3[%c0_45, %c4_46] : memref<1x9xf32, #tpu.memory_space<smem>>
    %120 = vector.shape_cast %87 : vector<1x8xf32> to vector<1x1x8xf32>
    %cst_47 = arith.constant dense<0.000000e+00> : vector<1xf32>
    %121 = vector.multi_reduction <add>, %120, %cst_47 [1, 2] : vector<1x1x8xf32> to vector<1xf32>
    %122 = vector.shape_cast %121 : vector<1xf32> to vector<1x1x1xf32>
    %123 = vector.extract %122[0, 0, 0] : f32 from vector<1x1x1xf32>
    %c0_48 = arith.constant 0 : index
    %c5_49 = arith.constant 5 : index
    %124 = memref.load %arg3[%c0_48, %c5_49] : memref<1x9xf32, #tpu.memory_space<smem>>
    memref.store %123, %arg3[%c0_48, %c5_49] : memref<1x9xf32, #tpu.memory_space<smem>>
    %125 = vector.shape_cast %94 : vector<1x8xf32> to vector<1x1x8xf32>
    %cst_50 = arith.constant dense<0.000000e+00> : vector<1xf32>
    %126 = vector.multi_reduction <add>, %125, %cst_50 [1, 2] : vector<1x1x8xf32> to vector<1xf32>
    %127 = vector.shape_cast %126 : vector<1xf32> to vector<1x1x1xf32>
    %128 = vector.extract %127[0, 0, 0] : f32 from vector<1x1x1xf32>
    %c0_51 = arith.constant 0 : index
    %c6_52 = arith.constant 6 : index
    %129 = memref.load %arg3[%c0_51, %c6_52] : memref<1x9xf32, #tpu.memory_space<smem>>
    memref.store %128, %arg3[%c0_51, %c6_52] : memref<1x9xf32, #tpu.memory_space<smem>>
    %130 = vector.shape_cast %8 : vector<1x8xf32> to vector<1x1x8xf32>
    %cst_53 = arith.constant dense<0.000000e+00> : vector<1xf32>
    %131 = vector.multi_reduction <add>, %130, %cst_53 [1, 2] : vector<1x1x8xf32> to vector<1xf32>
    %132 = vector.shape_cast %131 : vector<1xf32> to vector<1x1x1xf32>
    %133 = vector.extract %132[0, 0, 0] : f32 from vector<1x1x1xf32>
    %c0_54 = arith.constant 0 : index
    %c7_55 = arith.constant 7 : index
    %134 = memref.load %arg3[%c0_54, %c7_55] : memref<1x9xf32, #tpu.memory_space<smem>>
    memref.store %133, %arg3[%c0_54, %c7_55] : memref<1x9xf32, #tpu.memory_space<smem>>
    %135 = vector.shape_cast %76 : vector<1x8xf32> to vector<1x1x8xf32>
    %cst_56 = arith.constant dense<0.000000e+00> : vector<1xf32>
    %136 = vector.multi_reduction <add>, %135, %cst_56 [1, 2] : vector<1x1x8xf32> to vector<1xf32>
    %137 = vector.shape_cast %136 : vector<1xf32> to vector<1x1x1xf32>
    %138 = vector.extract %137[0, 0, 0] : f32 from vector<1x1x1xf32>
    %c0_57 = arith.constant 0 : index
    %c8 = arith.constant 8 : index
    %139 = memref.load %arg3[%c0_57, %c8] : memref<1x9xf32, #tpu.memory_space<smem>>
    memref.store %138, %arg3[%c0_57, %c8] : memref<1x9xf32, #tpu.memory_space<smem>>
    return
  }
  func.func @transform_0(%arg0: i32) -> (i32, i32) {
    %c0_i32 = arith.constant 0 : i32
    %c0_i32_0 = arith.constant 0 : i32
    return %c0_i32, %arg0 : i32, i32
  }
  func.func @transform_1(%arg0: i32) -> (i32, i32) {
    %c0_i32 = arith.constant 0 : i32
    %c0_i32_0 = arith.constant 0 : i32
    return %c0_i32, %arg0 : i32, i32
  }
  func.func @transform_2(%arg0: i32) -> (i32, i32) {
    %c0_i32 = arith.constant 0 : i32
    %c0_i32_0 = arith.constant 0 : i32
    return %arg0, %c0_i32 : i32, i32
  }
}

</mosaic_0001>

<llo_original>
// kernel: tpu_custom_call.1
$region0: #{tpu_custom_call.1}
  #allocation0 [shape = 'u32[]', space=smem, size = 0x4, offset = 0x4, fixed_abs, tag = 'smem constant byte address 0x4 - core index']
  #allocation1 [shape = 'u32[144,128]{1,0:T(1,128)}', space=vmem, size = 0x12000, scoped, tag = 'internal scratch']
  %s0 = inlined_call_operand.vmem [shape: f32[11,8], index: 0, kind: input, shape index: {}]
  %s1 = inlined_call_operand.vmem [shape: f32[8,8], index: 1, kind: input, shape index: {}]
  %s2 = inlined_call_operand.hbm [shape: f32[1,9], index: 2, kind: output, shape index: {}]
  %s3 = sld [smem:[#allocation0]]
  $region18: #{tpu_custom_call.1} parent=0
    _
  %s5 = ssub.s32 1, %s3
  %s6 = scalar_select 0, %s5, %s3
  $region1: #{tpu_custom_call.1} parent=0
    #allocation2 [shape = 'u8[512]{0}', space=smem, size = 0x200, scoped, tag = 'output window, operand 0, single buffered']
    #allocation3 [shape = 's32[1]{0}', space=sflag, size = 0x4, scoped, tag = 'scoped memory for tpu_custom_call.1']
    %7 = vsyncpa [#allocation3], 0
    // Predicated region
    $region2: #{tpu_custom_call.1} parent=1 // pred_check
      _
    $region3: #{tpu_custom_call.1} parent=1 // pred_check_branch
      %9 = sbr.rel (0) target = $region5
    $region4: #{tpu_custom_call.1} parent=1 // pred_region
      _
    $region5: #{tpu_custom_call.1} parent=1 // pred_fallthru
      _
    // Predicated region
    $region6: #{tpu_custom_call.1} parent=1 // pred_check
      _
    $region7: #{tpu_custom_call.1} parent=1 // pred_check_branch
      %11 = sbr.rel (0) target = $region9
    $region8: #{tpu_custom_call.1} parent=1 // pred_region
      _
    $region9: #{tpu_custom_call.1} parent=1 // pred_fallthru
      _
    %v12 = vld [vmem:[%s1] sm:$0x1]
    %v14 = vld [vmem:[%s1 + $0x1] sm:$0x1]
    %v16 = vld [vmem:[%s1 + $0x2] sm:$0x1]
    %v18 = vld [vmem:[%s1 + $0x3] sm:$0x1]
    %v19 = vld [vmem:[%s1 + $0x4] sm:$0x1]
    %v20 = vld [vmem:[%s1 + $0x5] sm:$0x1]
    %v21 = vld [vmem:[%s1 + $0x6] sm:$0x1]
    %v22 = vld [vmem:[%s1 + $0x7] sm:$0x1]
    %v23 = vld [vmem:[%s0] sm:$0x3]
    %vm24 = vcmask 58368
    %v25 = vsel %vm24, %v23, -inf
    %v26 = vrot.slane %v25, 4
    %v27 = vmax.f32 %v25, %v26
    %v28 = vrot.slane %v27, 2
    %v29 = vmax.f32 %v27, %v28
    %v30 = vrot.slane %v29, 1
    %v31 = vmax.f32 %v29, %v30
    %v32 = vsub.f32 %v23, %v31
    %v33 = vmul.f32 %v32, 1.442695
    %v34 = vpow.pop %v33
    %v35 = vsel %vm24, %v34, 0.0
    %v36 = vrot.slane %v35, 4
    %v37 = vadd.f32 %v35, %v36
    %v38 = vrot.slane %v37, 2
    %v39 = vadd.f32 %v37, %v38
    %v40 = vrot.slane %v39, 1
    %v41 = vadd.f32 %v39, %v40
    %v42 = vlog2.pop %v41
    %v43 = vmul.f32 %v42, 0.6931472
    %v44 = vadd.f32 %v43, %v31
    %v45 = vlaneseq
    %v46 = vshrl.u32 %v45, 7
    %v47 = vlaneseq
    %v48 = vshrl.u32 %v47, 7
    %v49 = vsub.s32 0, %v48
    %v50 = vrot.slane %v12, %v49
    %vm51 = vcmp.eq.s32.totalorder %v46, %v50
    %v52 = vsel %vm51, %v23, 0.0
    %v53 = vsel %vm24, %v52, 0.0
    %v54 = vrot.slane %v53, 4
    %v55 = vadd.f32 %v53, %v54
    %v56 = vrot.slane %v55, 2
    %v57 = vadd.f32 %v55, %v56
    %v58 = vrot.slane %v57, 1
    %v59 = vadd.f32 %v57, %v58
    %v60 = vsub.f32 %v44, %v59
    %v61 = vld [vmem:[%s0 + $0x2] sm:$0xf]
    %vm62 = vcmask 60416
    %v63 = vsel %vm62, %v61, -inf
    %v64 = vrot.slane %v63, 4
    %v65 = vmax.f32 %v63, %v64
    %v66 = vrot.slane %v65, 2
    %v67 = vmax.f32 %v65, %v66
    %v68 = vrot.slane %v67, 1
    %v69 = vmax.f32 %v67, %v68
    %v70 = vsub.f32 %v61, %v69
    %v71 = vmul.f32 %v70, 1.442695
    %v72 = vpow.pop %v71
    %v73 = vsel %vm62, %v72, 0.0
    %v74 = vrot.slane %v73, 4
    %v75 = vadd.f32 %v73, %v74
    %v76 = vrot.slane %v75, 2
    %v77 = vadd.f32 %v75, %v76
    %v78 = vrot.slane %v77, 1
    %v79 = vadd.f32 %v77, %v78
    %v80 = vlog2.pop %v79
    %v81 = vmul.f32 %v80, 0.6931472
    %v82 = vadd.f32 %v81, %v69
    %v83 = vlaneseq
    %v84 = vshrl.u32 %v83, 7
    %v85 = vsub.s32 0, %v84
    %v86 = vrot.slane %v14, %v85
    %vm87 = vcmp.eq.s32.totalorder %v46, %v86
    %v88 = vsel %vm87, %v61, 0.0
    %v89 = vsel %vm62, %v88, 0.0
    %v90 = vrot.slane %v89, 4
    %v91 = vadd.f32 %v89, %v90
    %v92 = vrot.slane %v91, 2
    %v93 = vadd.f32 %v91, %v92
    %v94 = vrot.slane %v93, 1
    %v95 = vadd.f32 %v93, %v94
    %v96 = vsub.f32 %v82, %v95
    %v97 = vld [vmem:[%s0 + $0x6] sm:$0x1f]
    %vm98 = vcmask 61440
    %v99 = vsel %vm98, %v97, -inf
    %v100 = vrot.slane %v99, 4
    %v101 = vmax.f32 %v99, %v100
    %v102 = vrot.slane %v101, 2
    %v103 = vmax.f32 %v101, %v102
    %v104 = vrot.slane %v103, 1
    %v105 = vmax.f32 %v103, %v104
    %v106 = vsub.f32 %v97, %v105
    %v107 = vmul.f32 %v106, 1.442695
    %v108 = vpow.pop %v107
    %v109 = vsel %vm98, %v108, 0.0
    %v110 = vrot.slane %v109, 4
    %v111 = vadd.f32 %v109, %v110
    %v112 = vrot.slane %v111, 2
    %v113 = vadd.f32 %v111, %v112
    %v114 = vrot.slane %v113, 1
    %v115 = vadd.f32 %v113, %v114
    %v116 = vlog2.pop %v115
    %v117 = vmul.f32 %v116, 0.6931472
    %v118 = vadd.f32 %v117, %v105
    %v119 = vlaneseq
    %v120 = vshrl.u32 %v119, 7
    %v121 = vsub.s32 0, %v120
    %v122 = vrot.slane %v16, %v121
    %vm123 = vcmp.eq.s32.totalorder %v46, %v122
    %v124 = vsel %vm123, %v97, 0.0
    %v125 = vsel %vm98, %v124, 0.0
    %v126 = vrot.slane %v125, 4
    %v127 = vadd.f32 %v125, %v126
    %v128 = vrot.slane %v127, 2
    %v129 = vadd.f32 %v127, %v128
    %v130 = vrot.slane %v129, 1
    %v131 = vadd.f32 %v129, %v130
    %v132 = vsub.f32 %v118, %v131
    %vm133 = vcmp.eq.s32.totalorder %v12, 0
    %vm134 = vcmp.eq.s32.totalorder %v12, 1
    %v135 = vsub.f32 %v19, %v18
    %v136 = vsub.f32 %v21, 0.5
    %v137 = vmul.f32 %v136, %v136
    %v138 = vsub.f32 %v22, 0.5
    %v139 = vmul.f32 %v138, %v138
    %v140 = vadd.f32 %v137, %v139
    %v141 = vsel %vm133, %v96, 0.0
    %v142 = vsel %vm134, %v132, 0.0
    %v143 = vsel %vm133, 1, 0
    %v144 = vcvt.s32.f32 %v143
    %v145 = vsel %vm134, 1, 0
    %v146 = vcvt.s32.f32 %v145
    %v147 = vmul.f32 %v135, %v135
    %v148 = vsel %vm133, %v147, 0.0
    %v149 = vand.u32 2147483647, %v135
    %v150 = vand.u32 2147483647, %v18
    %v151 = vadd.f32 %v150, 1e-08
    %v152 = vrcp.pop %v151
    %v153 = vmul.f32 %v149, %v152
    %v154 = vsel %vm133, %v153, 0.0
    %vm155 = vcmask 57344
    %v156 = vsel %vm155, %v60, 0.0
    %157 = vadd.xlane.f32.xlu0 %v156
    %v158 = vpop.xlane.xlu0 %157
    %v159 = vrot.slane %v158, 4
    %v160 = vadd.f32 %v158, %v159
    %v161 = vrot.slane %v160, 2
    %v162 = vadd.f32 %v160, %v161
    %v163 = vrot.slane %v162, 1
    %v164 = vadd.f32 %v162, %v163
    %s165 = vtos %v164
    %s166 = scalar_lea.smem [#allocation2], 0
    %167 = sst [smem:[%s166]] %s165
    %v168 = vsel %vm155, %v141, 0.0
    %169 = vadd.xlane.f32.xlu0 %v168
    %v170 = vpop.xlane.xlu0 %169
    %v171 = vrot.slane %v170, 4
    %v172 = vadd.f32 %v170, %v171
    %v173 = vrot.slane %v172, 2
    %v174 = vadd.f32 %v172, %v173
    %v175 = vrot.slane %v174, 1
    %v176 = vadd.f32 %v174, %v175
    %s177 = vtos %v176
    %s178 = scalar_lea.smem [#allocation2], 1
    %179 = sst [smem:[%s178]] %s177
    %v180 = vsel %vm155, %v142, 0.0
    %181 = vadd.xlane.f32.xlu0 %v180
    %v182 = vpop.xlane.xlu0 %181
    %v183 = vrot.slane %v182, 4
    %v184 = vadd.f32 %v182, %v183
    %v185 = vrot.slane %v184, 2
    %v186 = vadd.f32 %v184, %v185
    %v187 = vrot.slane %v186, 1
    %v188 = vadd.f32 %v186, %v187
    %s189 = vtos %v188
    %s190 = scalar_lea.smem [#allocation2], 2
    %191 = sst [smem:[%s190]] %s189
    %v192 = vsel %vm155, %v144, 0.0
    %193 = vadd.xlane.f32.xlu0 %v192
    %v194 = vpop.xlane.xlu0 %193
    %v195 = vrot.slane %v194, 4
    %v196 = vadd.f32 %v194, %v195
    %v197 = vrot.slane %v196, 2
    %v198 = vadd.f32 %v196, %v197
    %v199 = vrot.slane %v198, 1
    %v200 = vadd.f32 %v198, %v199
    %s201 = vtos %v200
    %s202 = scalar_lea.smem [#allocation2], 3
    %203 = sst [smem:[%s202]] %s201
    %v204 = vsel %vm155, %v146, 0.0
    %205 = vadd.xlane.f32.xlu0 %v204
    %v206 = vpop.xlane.xlu0 %205
    %v207 = vrot.slane %v206, 4
    %v208 = vadd.f32 %v206, %v207
    %v209 = vrot.slane %v208, 2
    %v210 = vadd.f32 %v208, %v209
    %v211 = vrot.slane %v210, 1
    %v212 = vadd.f32 %v210, %v211
    %s213 = vtos %v212
    %s214 = scalar_lea.smem [#allocation2], 4
    %215 = sst [smem:[%s214]] %s213
    %v216 = vsel %vm155, %v148, 0.0
    %217 = vadd.xlane.f32.xlu0 %v216
    %v218 = vpop.xlane.xlu0 %217
    %v219 = vrot.slane %v218, 4
    %v220 = vadd.f32 %v218, %v219
    %v221 = vrot.slane %v220, 2
    %v222 = vadd.f32 %v220, %v221
    %v223 = vrot.slane %v222, 1
    %v224 = vadd.f32 %v222, %v223
    %s225 = vtos %v224
    %s226 = scalar_lea.smem [#allocation2], 5
    %227 = sst [smem:[%s226]] %s225
    %v228 = vsel %vm155, %v154, 0.0
    %229 = vadd.xlane.f32.xlu0 %v228
    %v230 = vpop.xlane.xlu0 %229
    %v231 = vrot.slane %v230, 4
    %v232 = vadd.f32 %v230, %v231
    %v233 = vrot.slane %v232, 2
    %v234 = vadd.f32 %v232, %v233
    %v235 = vrot.slane %v234, 1
    %v236 = vadd.f32 %v234, %v235
    %s237 = vtos %v236
    %s238 = scalar_lea.smem [#allocation2], 6
    %239 = sst [smem:[%s238]] %s237
    %v240 = vsel %vm155, %v20, 0.0
    %241 = vadd.xlane.f32.xlu0 %v240
    %v242 = vpop.xlane.xlu0 %241
    %v243 = vrot.slane %v242, 4
    %v244 = vadd.f32 %v242, %v243
    %v245 = vrot.slane %v244, 2
    %v246 = vadd.f32 %v244, %v245
    %v247 = vrot.slane %v246, 1
    %v248 = vadd.f32 %v246, %v247
    %s249 = vtos %v248
    %s250 = scalar_lea.smem [#allocation2], 7
    %251 = sst [smem:[%s250]] %s249
    %v252 = vsel %vm155, %v140, 0.0
    %253 = vadd.xlane.f32.xlu0 %v252
    %v254 = vpop.xlane.xlu0 %253
    %v255 = vrot.slane %v254, 4
    %v256 = vadd.f32 %v254, %v255
    %v257 = vrot.slane %v256, 2
    %v258 = vadd.f32 %v256, %v257
    %v259 = vrot.slane %v258, 1
    %v260 = vadd.f32 %v258, %v259
    %s261 = vtos %v260
    %s262 = scalar_lea.smem [#allocation2], 8
    %263 = sst [smem:[%s262]] %s261
    // Predicated region
    $region10: #{tpu_custom_call.1} parent=1 // pred_check
      _
    $region11: #{tpu_custom_call.1} parent=1 // pred_check_branch
      %265 = sbr.rel (0) target = $region13
    $region12: #{tpu_custom_call.1} parent=1 // pred_region
      %s267 = ssub.s32 16, 16
      %268 = vsyncadd [#allocation3], %s267
      %271 = dma.smem_to_hbm [#allocation2], 16, %s2, [#allocation3]
    $region13: #{tpu_custom_call.1} parent=1 // pred_fallthru
      _
    // Predicated region
    $region14: #{tpu_custom_call.1} parent=1 // pred_check
      _
    $region15: #{tpu_custom_call.1} parent=1 // pred_check_branch
      %273 = sbr.rel (0) target = $region17
    $region16: #{tpu_custom_call.1} parent=1 // pred_region
      %274 = dma.done [#allocation3], 16
    $region17: #{tpu_custom_call.1} parent=1 // pred_fallthru
      _
    %275 = sfence
    %276 = vsyncpa [#allocation3], 1

</llo_original>
